<compile_context>
chip_gen: v7x
topology: tpu7x:2x2x1
jax: 0.10.0
libtpu: 0.0.40
codegen_flags: <defaults>
</compile_context>

<pallas_src>
import functools

import jax
import jax.numpy as jnp
from jax import lax
from jax.experimental import pallas as pl
from jax.experimental.pallas import tpu as pltpu


def _smooth_l1(d):
    ad = jnp.abs(d)
    return jnp.where(ad < 1.0, 0.5 * d * d, ad - 0.5)


def _loss_kernel(dboxes_ref, ploc_ref, plabel_ref, gloc_ref, glabel_ref, out_ref,
                 *, scale_xy, scale_wh, nb, nc, bt, k_tile):
    db = dboxes_ref[0]            # (4, nb)
    db_xy = db[:2, :]
    db_wh = db[2:, :]

    # Hoisted constants (shared across samples and k-blocks).
    cls_iota = lax.broadcasted_iota(jnp.int32, (nc, nb), 0)

    block_starts = list(range(0, nb, k_tile))
    consts = {}
    for ktt in sorted({min(k_tile, nb - s) for s in block_starts}):
        # one-hot "identity" used to move a (1, ktt) lane chunk into a (ktt, 1) column
        eye = (lax.broadcasted_iota(jnp.int32, (ktt, ktt), 0)
               == lax.broadcasted_iota(jnp.int32, (ktt, ktt), 1))
        # diff[r, j] = j - r  (so the stable tie-break  k0 + r < j  is  diff > k0)
        diff = (lax.broadcasted_iota(jnp.int32, (ktt, nb), 1)
                - lax.broadcasted_iota(jnp.int32, (ktt, nb), 0))
        # all-ones lhs for the MXU count-reduction (bf16 is exact for 0/1 values)
        ones8 = jnp.ones((8, ktt), jnp.bfloat16)
        consts[ktt] = (eye, diff, ones8)

    for b in range(bt):           # static unroll over the sample block
        ploc = ploc_ref[b]        # (4, nb)
        gloc = gloc_ref[b]        # (4, nb)
        plabel = plabel_ref[b]    # (nc, nb)
        glabel = glabel_ref[b]    # (1, nb) int32

        mask_b = glabel > 0                                  # (1, nb)
        mask_f = mask_b.astype(jnp.float32)
        pos_num = jnp.sum(mask_f, axis=1, keepdims=True)     # (1, 1)

        # ---- location target encoding (_location_vec) + SmoothL1 ----
        gxy = scale_xy * (gloc[:2, :] - db_xy) / db_wh                      # (2, nb)
        gwh = scale_wh * jnp.log(gloc[2:, :] / db_wh)                       # (2, nb)
        loc_per_box = (jnp.sum(_smooth_l1(ploc[:2, :] - gxy), axis=0, keepdims=True)
                       + jnp.sum(_smooth_l1(ploc[2:, :] - gwh), axis=0, keepdims=True))
        loc_loss = jnp.sum(mask_f * loc_per_box, axis=1, keepdims=True)     # (1, 1)

        # ---- per-box cross entropy (softmax over the class/sublane axis) ----
        m = jnp.max(plabel, axis=0, keepdims=True)                          # (1, nb)
        lse = m + jnp.log(jnp.sum(jnp.exp(plabel - m), axis=0, keepdims=True))
        sel = jnp.sum(jnp.where(cls_iota == glabel, plabel, 0.0),
                      axis=0, keepdims=True)                                # (1, nb)
        con = lse - sel                                                     # (1, nb)

        # ---- hard negative mining: stable descending-sort rank, k-tiled ----
        con_neg = jnp.where(mask_b, 0.0, con)                               # (1, nb)

        rank8 = jnp.zeros((8, nb), jnp.float32)
        for k0 in block_starts:
            ktt = min(k_tile, nb - k0)
            eye, diff, ones8 = consts[ktt]
            # (1, ktt) chunk -> (ktt, 1) column, bit-exactly (select + sum of zeros).
            chunk = con_neg[:, k0:k0 + ktt]                                 # (1, ktt)
            cn_col = jnp.sum(jnp.where(eye, chunk, 0.0), axis=1, keepdims=True)  # (ktt, 1)
            greater = cn_col > con_neg                                      # (ktt, nb)
            tie = jnp.logical_and(cn_col == con_neg, diff > k0)             # stable tie-break
            slab = jnp.logical_or(greater, tie).astype(jnp.float32).astype(jnp.bfloat16)
            # Count over k on the MXU: ones(8, ktt) @ slab (ktt, nb) -> (8, nb), f32 acc.
            rank8 = rank8 + jnp.dot(ones8, slab, preferred_element_type=jnp.float32)
        rank = rank8[0:1, :]                                                # (1, nb)

        neg_num = jnp.minimum(3.0 * pos_num, float(nb))                     # (1, 1)
        neg_f = (rank < neg_num).astype(jnp.float32)                        # (1, nb)

        con_loss = jnp.sum(con * (mask_f + neg_f), axis=1, keepdims=True)   # (1, 1)
        total = con_loss + loc_loss

        num_mask = (pos_num > 0.0).astype(jnp.float32)
        out_ref[b] = total * num_mask / jnp.maximum(pos_num, 1e-6)          # (1, 1)


def ssd_loss_pallas(ploc, plabel, gloc, glabel, dboxes, scale_xy, scale_wh,
                    *, k_tile=256, batch_tile=8):
    N, _, NB = ploc.shape
    C = plabel.shape[1]
    glabel3 = glabel.reshape(N, 1, NB).astype(jnp.int32)

    # Largest sample-block size that divides N (<= batch_tile).
    bt = 1
    for cand in (batch_tile, 8, 4, 2, 1):
        if cand <= N and N % cand == 0:
            bt = cand
            break
    kt = min(k_tile, NB)   # ragged last k-block handled inside the kernel

    kernel = functools.partial(_loss_kernel, scale_xy=float(scale_xy),
                               scale_wh=float(scale_wh), nb=NB, nc=C, bt=bt,
                               k_tile=kt)

    per_sample = pl.pallas_call(
        kernel,
        out_shape=jax.ShapeDtypeStruct((N, 1, 1), jnp.float32),
        grid_spec=pltpu.PrefetchScalarGridSpec(
            num_scalar_prefetch=0,
            grid=(N // bt,),
            in_specs=[
                pl.BlockSpec((1, 4, NB), lambda i: (0, 0, 0)),    # dboxes (shared)
                pl.BlockSpec((bt, 4, NB), lambda i: (i, 0, 0)),   # ploc
                pl.BlockSpec((bt, C, NB), lambda i: (i, 0, 0)),   # plabel
                pl.BlockSpec((bt, 4, NB), lambda i: (i, 0, 0)),   # gloc
                pl.BlockSpec((bt, 1, NB), lambda i: (i, 0, 0)),   # glabel
            ],
            out_specs=pl.BlockSpec((bt, 1, 1), lambda i: (i, 0, 0)),
        ),
        compiler_params=pltpu.CompilerParams(dimension_semantics=("parallel",)),
    )(dboxes, ploc, plabel, gloc, glabel3)

    return jnp.mean(per_sample[:, 0, 0])


def ssd_loss_ref(ploc, plabel, gloc, glabel, dboxes, scale_xy, scale_wh):
    """Pure-JAX reference, mirroring the PyTorch forward."""
    mask = glabel > 0
    pos_num = jnp.sum(mask, axis=1)

    gxy = scale_xy * (gloc[:, :2, :] - dboxes[:, :2, :]) / dboxes[:, 2:, :]
    gwh = scale_wh * jnp.log(gloc[:, 2:, :] / dboxes[:, 2:, :])
    vec_gd = jnp.concatenate([gxy, gwh], axis=1)

    d = ploc - vec_gd
    ad = jnp.abs(d)
    sl1 = jnp.where(ad < 1.0, 0.5 * d * d, ad - 0.5)
    loc_loss = jnp.sum(mask.astype(jnp.float32) * jnp.sum(sl1, axis=1), axis=1)

    lse = jax.scipy.special.logsumexp(plabel, axis=1)
    sel = jnp.take_along_axis(plabel, glabel[:, None, :], axis=1)[:, 0, :]
    con = lse - sel

    con_neg = jnp.where(mask, 0.0, con)
    con_idx = jnp.argsort(-con_neg, axis=1)     # stable, descending
    con_rank = jnp.argsort(con_idx, axis=1)
    neg_num = jnp.minimum(3 * pos_num, mask.shape[1])[:, None]
    neg_mask = con_rank < neg_num

    con_loss = jnp.sum(con * (mask.astype(jnp.float32) + neg_mask.astype(jnp.float32)), axis=1)
    total = con_loss + loc_loss
    num_mask = (pos_num > 0).astype(jnp.float32)
    pos_f = jnp.maximum(pos_num.astype(jnp.float32), 1e-6)
    return jnp.mean(total * num_mask / pos_f)


if __name__ == "__main__":
    N, C, NB = 2, 16, 128
    # SSD defaults: scale_xy = 1/0.1, scale_wh = 1/0.2
    scale_xy, scale_wh = 10.0, 5.0

    key = jax.random.PRNGKey(0)
    k1, k2, k3, k4, k5, k6, k7, k8 = jax.random.split(key, 8)

    ploc = jax.random.normal(k1, (N, 4, NB), jnp.float32)
    plabel = jax.random.normal(k2, (N, C, NB), jnp.float32)

    gloc_xy = jax.random.uniform(k3, (N, 2, NB), jnp.float32, 0.05, 0.95)
    gloc_wh = jax.random.uniform(k4, (N, 2, NB), jnp.float32, 0.05, 0.50)
    gloc = jnp.concatenate([gloc_xy, gloc_wh], axis=1)

    labels_raw = jax.random.randint(k5, (N, NB), 1, C)
    is_pos = jax.random.bernoulli(k6, 0.25, (N, NB))
    glabel = jnp.where(is_pos, labels_raw, 0).astype(jnp.int32)

    db_xy = jax.random.uniform(k7, (1, 2, NB), jnp.float32, 0.05, 0.95)
    db_wh = jax.random.uniform(k8, (1, 2, NB), jnp.float32, 0.10, 0.50)
    dboxes = jnp.concatenate([db_xy, db_wh], axis=1)   # deterministic "DefaultBoxes"

    out = ssd_loss_pallas(ploc, plabel, gloc, glabel, dboxes, scale_xy, scale_wh)
    out = jax.block_until_ready(out)

    ref = ssd_loss_ref(ploc, plabel, gloc, glabel, dboxes, scale_xy, scale_wh)
    ref = jax.block_until_ready(ref)

    assert jnp.isfinite(out), f"non-finite kernel output: {out}"
    assert jnp.allclose(out, ref, rtol=2e-3, atol=2e-3), f"mismatch: pallas={out} ref={ref}"

    print("KERNEL_OK")
</pallas_src>

<mosaic_0001>
module attributes {stable_mosaic.version = 11 : i64} {
  func.func @_loss_kernel(%arg0: i32, %arg1: memref<1x4x128xf32, #tpu.memory_space<vmem>>, %arg2: memref<2x4x128xf32, #tpu.memory_space<vmem>>, %arg3: memref<2x16x128xf32, #tpu.memory_space<vmem>>, %arg4: memref<2x4x128xf32, #tpu.memory_space<vmem>>, %arg5: memref<2x1x128xi32, #tpu.memory_space<vmem>>, %arg6: memref<2x1x1xf32, #tpu.memory_space<vmem>>) attributes {dimension_semantics = [#tpu.dimension_semantics<parallel>], iteration_bounds = array<i64: 1>, scalar_prefetch = 0 : i64, scratch_operands = 0 : i64, tpu.core_type = #tpu.core_type<tc>, window_params = [{pipeline_mode = #tpu.pipeline_mode<synchronous>, transform_indices = @transform_0, window_bounds = array<i64: 1, 4, 128>}, {transform_indices = @transform_1, window_bounds = array<i64: 2, 4, 128>}, {transform_indices = @transform_2, window_bounds = array<i64: 2, 16, 128>}, {transform_indices = @transform_3, window_bounds = array<i64: 2, 4, 128>}, {transform_indices = @transform_4, window_bounds = array<i64: 2, 1, 128>}, {transform_indices = @transform_5, window_bounds = array<i64: 2, 1, 1>}]} {
    %c0 = arith.constant 0 : index
    %c0_0 = arith.constant 0 : index
    %c0_1 = arith.constant 0 : index
    %0 = vector.load %arg1[%c0, %c0_0, %c0_1] : memref<1x4x128xf32, #tpu.memory_space<vmem>>, vector<1x4x128xf32>
    %1 = vector.shape_cast %0 : vector<1x4x128xf32> to vector<4x128xf32>
    %2 = vector.extract_strided_slice %1 {offsets = [0, 0], sizes = [2, 128], strides = [1, 1]} : vector<4x128xf32> to vector<2x128xf32>
    %3 = vector.extract_strided_slice %1 {offsets = [2, 0], sizes = [2, 128], strides = [1, 1]} : vector<4x128xf32> to vector<2x128xf32>
    %4 = tpu.iota {dimensions = array<i32: 0>} : vector<16x128xi32>
    %5 = tpu.iota {dimensions = array<i32: 0>} : vector<128x128xi32>
    %6 = tpu.iota {dimensions = array<i32: 1>} : vector<128x128xi32>
    %7 = arith.cmpi eq, %5, %6 : vector<128x128xi32>
    %8 = tpu.iota {dimensions = array<i32: 1>} : vector<128x128xi32>
    %9 = tpu.iota {dimensions = array<i32: 0>} : vector<128x128xi32>
    %10 = arith.subi %8, %9 : vector<128x128xi32>
    %cst = arith.constant 1.000000e+00 : bf16
    %11 = vector.broadcast %cst : bf16 to vector<8x128xbf16>
    %c0_2 = arith.constant 0 : index
    %c0_3 = arith.constant 0 : index
    %c0_4 = arith.constant 0 : index
    %12 = vector.load %arg2[%c0_2, %c0_3, %c0_4] : memref<2x4x128xf32, #tpu.memory_space<vmem>>, vector<1x4x128xf32>
    %13 = vector.shape_cast %12 : vector<1x4x128xf32> to vector<4x128xf32>
    %c0_5 = arith.constant 0 : index
    %c0_6 = arith.constant 0 : index
    %c0_7 = arith.constant 0 : index
    %14 = vector.load %arg4[%c0_5, %c0_6, %c0_7] : memref<2x4x128xf32, #tpu.memory_space<vmem>>, vector<1x4x128xf32>
    %15 = vector.shape_cast %14 : vector<1x4x128xf32> to vector<4x128xf32>
    %c0_8 = arith.constant 0 : index
    %c0_9 = arith.constant 0 : index
    %c0_10 = arith.constant 0 : index
    %16 = vector.load %arg3[%c0_8, %c0_9, %c0_10] : memref<2x16x128xf32, #tpu.memory_space<vmem>>, vector<1x16x128xf32>
    %17 = vector.shape_cast %16 : vector<1x16x128xf32> to vector<16x128xf32>
    %c0_11 = arith.constant 0 : index
    %c0_12 = arith.constant 0 : index
    %c0_13 = arith.constant 0 : index
    %18 = vector.load %arg5[%c0_11, %c0_12, %c0_13] : memref<2x1x128xi32, #tpu.memory_space<vmem>>, vector<1x1x128xi32>
    %19 = vector.shape_cast %18 : vector<1x1x128xi32> to vector<1x128xi32>
    %c0_i32 = arith.constant 0 : i32
    %20 = vector.broadcast %c0_i32 : i32 to vector<1x128xi32>
    %21 = arith.cmpi sgt, %19, %20 : vector<1x128xi32>
    %22 = arith.extui %21 : vector<1x128xi1> to vector<1x128xi32>
    %23 = arith.sitofp %22 : vector<1x128xi32> to vector<1x128xf32>
    %cst_14 = arith.constant dense<0.000000e+00> : vector<1xf32>
    %24 = vector.multi_reduction <add>, %23, %cst_14 [1] : vector<1x128xf32> to vector<1xf32>
    %25 = vector.shape_cast %24 : vector<1xf32> to vector<1x1xf32>
    %26 = vector.extract_strided_slice %15 {offsets = [0, 0], sizes = [2, 128], strides = [1, 1]} : vector<4x128xf32> to vector<2x128xf32>
    %27 = arith.subf %26, %2 : vector<2x128xf32>
    %cst_15 = arith.constant 1.000000e+01 : f32
    %28 = vector.broadcast %cst_15 : f32 to vector<2x128xf32>
    %29 = arith.mulf %28, %27 : vector<2x128xf32>
    %30 = arith.divf %29, %3 : vector<2x128xf32>
    %31 = vector.extract_strided_slice %15 {offsets = [2, 0], sizes = [2, 128], strides = [1, 1]} : vector<4x128xf32> to vector<2x128xf32>
    %32 = arith.divf %31, %3 : vector<2x128xf32>
    %33 = math.log %32 : vector<2x128xf32>
    %cst_16 = arith.constant 5.000000e+00 : f32
    %34 = vector.broadcast %cst_16 : f32 to vector<2x128xf32>
    %35 = arith.mulf %34, %33 : vector<2x128xf32>
    %36 = vector.extract_strided_slice %13 {offsets = [0, 0], sizes = [2, 128], strides = [1, 1]} : vector<4x128xf32> to vector<2x128xf32>
    %37 = arith.subf %36, %30 : vector<2x128xf32>
    %38 = math.absf %37 : vector<2x128xf32>
    %cst_17 = arith.constant 1.000000e+00 : f32
    %39 = vector.broadcast %cst_17 : f32 to vector<2x128xf32>
    %40 = arith.cmpf olt, %38, %39 : vector<2x128xf32>
    %cst_18 = arith.constant 5.000000e-01 : f32
    %41 = vector.broadcast %cst_18 : f32 to vector<2x128xf32>
    %42 = arith.mulf %41, %37 : vector<2x128xf32>
    %43 = arith.mulf %42, %37 : vector<2x128xf32>
    %cst_19 = arith.constant 5.000000e-01 : f32
    %44 = vector.broadcast %cst_19 : f32 to vector<2x128xf32>
    %45 = arith.subf %38, %44 : vector<2x128xf32>
    %46 = arith.select %40, %43, %45 : vector<2x128xi1>, vector<2x128xf32>
    %cst_20 = arith.constant dense<0.000000e+00> : vector<128xf32>
    %47 = vector.multi_reduction <add>, %46, %cst_20 [0] : vector<2x128xf32> to vector<128xf32>
    %48 = vector.shape_cast %47 : vector<128xf32> to vector<1x128xf32>
    %49 = vector.extract_strided_slice %13 {offsets = [2, 0], sizes = [2, 128], strides = [1, 1]} : vector<4x128xf32> to vector<2x128xf32>
    %50 = arith.subf %49, %35 : vector<2x128xf32>
    %51 = math.absf %50 : vector<2x128xf32>
    %cst_21 = arith.constant 1.000000e+00 : f32
    %52 = vector.broadcast %cst_21 : f32 to vector<2x128xf32>
    %53 = arith.cmpf olt, %51, %52 : vector<2x128xf32>
    %cst_22 = arith.constant 5.000000e-01 : f32
    %54 = vector.broadcast %cst_22 : f32 to vector<2x128xf32>
    %55 = arith.mulf %54, %50 : vector<2x128xf32>
    %56 = arith.mulf %55, %50 : vector<2x128xf32>
    %cst_23 = arith.constant 5.000000e-01 : f32
    %57 = vector.broadcast %cst_23 : f32 to vector<2x128xf32>
    %58 = arith.subf %51, %57 : vector<2x128xf32>
    %59 = arith.select %53, %56, %58 : vector<2x128xi1>, vector<2x128xf32>
    %cst_24 = arith.constant dense<0.000000e+00> : vector<128xf32>
    %60 = vector.multi_reduction <add>, %59, %cst_24 [0] : vector<2x128xf32> to vector<128xf32>
    %61 = vector.shape_cast %60 : vector<128xf32> to vector<1x128xf32>
    %62 = arith.addf %48, %61 : vector<1x128xf32>
    %63 = arith.mulf %23, %62 : vector<1x128xf32>
    %cst_25 = arith.constant dense<0.000000e+00> : vector<1xf32>
    %64 = vector.multi_reduction <add>, %63, %cst_25 [1] : vector<1x128xf32> to vector<1xf32>
    %65 = vector.shape_cast %64 : vector<1xf32> to vector<1x1xf32>
    %cst_26 = arith.constant dense<0xFF800000> : vector<128xf32>
    %66 = vector.multi_reduction <maximumf>, %17, %cst_26 [0] : vector<16x128xf32> to vector<128xf32>
    %67 = vector.shape_cast %66 : vector<128xf32> to vector<1x128xf32>
    %68 = vector.broadcast %67 : vector<1x128xf32> to vector<16x128xf32>
    %69 = arith.subf %17, %68 : vector<16x128xf32>
    %70 = math.exp %69 : vector<16x128xf32>
    %cst_27 = arith.constant dense<0.000000e+00> : vector<128xf32>
    %71 = vector.multi_reduction <add>, %70, %cst_27 [0] : vector<16x128xf32> to vector<128xf32>
    %72 = vector.shape_cast %71 : vector<128xf32> to vector<1x128xf32>
    %73 = math.log %72 : vector<1x128xf32>
    %74 = arith.addf %67, %73 : vector<1x128xf32>
    %75 = vector.broadcast %19 : vector<1x128xi32> to vector<16x128xi32>
    %76 = arith.cmpi eq, %4, %75 : vector<16x128xi32>
    %cst_28 = arith.constant 0.000000e+00 : f32
    %77 = vector.broadcast %cst_28 : f32 to vector<16x128xf32>
    %78 = arith.select %76, %17, %77 : vector<16x128xi1>, vector<16x128xf32>
    %cst_29 = arith.constant dense<0.000000e+00> : vector<128xf32>
    %79 = vector.multi_reduction <add>, %78, %cst_29 [0] : vector<16x128xf32> to vector<128xf32>
    %80 = vector.shape_cast %79 : vector<128xf32> to vector<1x128xf32>
    %81 = arith.subf %74, %80 : vector<1x128xf32>
    %cst_30 = arith.constant 0.000000e+00 : f32
    %82 = vector.broadcast %cst_30 : f32 to vector<1x128xf32>
    %83 = arith.select %21, %82, %81 : vector<1x128xi1>, vector<1x128xf32>
    %cst_31 = arith.constant 0.000000e+00 : f32
    %84 = vector.broadcast %cst_31 : f32 to vector<8x128xf32>
    %cst_32 = arith.constant 0.000000e+00 : f32
    %85 = vector.shape_cast %83 : vector<1x128xf32> to vector<1x128xf32>
    %86 = vector.broadcast %85 : vector<1x128xf32> to vector<128x128xf32>
    %87 = vector.broadcast %cst_32 : f32 to vector<128x128xf32>
    %88 = arith.select %7, %86, %87 : vector<128x128xi1>, vector<128x128xf32>
    %cst_33 = arith.constant dense<0.000000e+00> : vector<128xf32>
    %89 = vector.multi_reduction <add>, %88, %cst_33 [1] : vector<128x128xf32> to vector<128xf32>
    %90 = vector.shape_cast %89 : vector<128xf32> to vector<128x1xf32>
    %91 = vector.broadcast %90 : vector<128x1xf32> to vector<128x128xf32>
    %92 = vector.broadcast %83 : vector<1x128xf32> to vector<128x128xf32>
    %93 = arith.cmpf ogt, %91, %92 : vector<128x128xf32>
    %94 = vector.broadcast %90 : vector<128x1xf32> to vector<128x128xf32>
    %95 = vector.broadcast %83 : vector<1x128xf32> to vector<128x128xf32>
    %96 = arith.cmpf oeq, %94, %95 : vector<128x128xf32>
    %c0_i32_34 = arith.constant 0 : i32
    %97 = vector.broadcast %c0_i32_34 : i32 to vector<128x128xi32>
    %98 = arith.cmpi sgt, %10, %97 : vector<128x128xi32>
    %99 = arith.andi %96, %98 : vector<128x128xi1>
    %100 = arith.ori %93, %99 : vector<128x128xi1>
    %101 = arith.extui %100 : vector<128x128xi1> to vector<128x128xi32>
    %102 = arith.sitofp %101 : vector<128x128xi32> to vector<128x128xf32>
    %103 = arith.truncf %102 : vector<128x128xf32> to vector<128x128xbf16>
    %cst_35 = arith.constant dense<0.000000e+00> : vector<8x128xf32>
    %104 = tpu.matmul %11, %103, %cst_35 {dimension_numbers = #tpu.dot_dimension_numbers<[1], [0], [0], [1], [0, 0, 1, 1], [], []>} : vector<8x128xbf16>, vector<128x128xbf16>, vector<8x128xf32> -> vector<8x128xf32>
    %105 = arith.addf %84, %104 : vector<8x128xf32>
    %106 = vector.extract_strided_slice %105 {offsets = [0, 0], sizes = [1, 128], strides = [1, 1]} : vector<8x128xf32> to vector<1x128xf32>
    %cst_36 = arith.constant 3.000000e+00 : f32
    %107 = vector.broadcast %cst_36 : f32 to vector<1x1xf32>
    %108 = arith.mulf %107, %25 : vector<1x1xf32>
    %cst_37 = arith.constant 1.280000e+02 : f32
    %109 = vector.broadcast %cst_37 : f32 to vector<1x1xf32>
    %110 = arith.minimumf %108, %109 : vector<1x1xf32>
    %111 = vector.broadcast %110 : vector<1x1xf32> to vector<1x128xf32>
    %112 = arith.cmpf olt, %106, %111 : vector<1x128xf32>
    %113 = arith.extui %112 : vector<1x128xi1> to vector<1x128xi32>
    %114 = arith.sitofp %113 : vector<1x128xi32> to vector<1x128xf32>
    %115 = arith.addf %23, %114 : vector<1x128xf32>
    %116 = arith.mulf %81, %115 : vector<1x128xf32>
    %cst_38 = arith.constant dense<0.000000e+00> : vector<1xf32>
    %117 = vector.multi_reduction <add>, %116, %cst_38 [1] : vector<1x128xf32> to vector<1xf32>
    %118 = vector.shape_cast %117 : vector<1xf32> to vector<1x1xf32>
    %119 = arith.addf %118, %65 : vector<1x1xf32>
    %cst_39 = arith.constant 0.000000e+00 : f32
    %120 = vector.broadcast %cst_39 : f32 to vector<1x1xf32>
    %121 = arith.cmpf ogt, %25, %120 : vector<1x1xf32>
    %122 = arith.extui %121 : vector<1x1xi1> to vector<1x1xi32>
    %123 = arith.sitofp %122 : vector<1x1xi32> to vector<1x1xf32>
    %124 = arith.mulf %119, %123 : vector<1x1xf32>
    %cst_40 = arith.constant 9.99999997E-7 : f32
    %125 = vector.broadcast %cst_40 : f32 to vector<1x1xf32>
    %126 = arith.maximumf %25, %125 : vector<1x1xf32>
    %127 = arith.divf %124, %126 : vector<1x1xf32>
    %c0_41 = arith.constant 0 : index
    %c0_42 = arith.constant 0 : index
    %c0_43 = arith.constant 0 : index
    %128 = vector.load %arg6[%c0_41, %c0_42, %c0_43] : memref<2x1x1xf32, #tpu.memory_space<vmem>>, vector<1x1x1xf32>
    %129 = vector.shape_cast %128 : vector<1x1x1xf32> to vector<1x1xf32>
    %130 = vector.shape_cast %127 : vector<1x1xf32> to vector<1x1x1xf32>
    tpu.vector_store %arg6[%c0_41, %c0_42, %c0_43], %130 {strides = array<i32>} : memref<2x1x1xf32, #tpu.memory_space<vmem>>, vector<1x1x1xf32>,
    %c1 = arith.constant 1 : index
    %c0_44 = arith.constant 0 : index
    %c0_45 = arith.constant 0 : index
    %131 = vector.load %arg2[%c1, %c0_44, %c0_45] : memref<2x4x128xf32, #tpu.memory_space<vmem>>, vector<1x4x128xf32>
    %132 = vector.shape_cast %131 : vector<1x4x128xf32> to vector<4x128xf32>
    %c1_46 = arith.constant 1 : index
    %c0_47 = arith.constant 0 : index
    %c0_48 = arith.constant 0 : index
    %133 = vector.load %arg4[%c1_46, %c0_47, %c0_48] : memref<2x4x128xf32, #tpu.memory_space<vmem>>, vector<1x4x128xf32>
    %134 = vector.shape_cast %133 : vector<1x4x128xf32> to vector<4x128xf32>
    %c1_49 = arith.constant 1 : index
    %c0_50 = arith.constant 0 : index
    %c0_51 = arith.constant 0 : index
    %135 = vector.load %arg3[%c1_49, %c0_50, %c0_51] : memref<2x16x128xf32, #tpu.memory_space<vmem>>, vector<1x16x128xf32>
    %136 = vector.shape_cast %135 : vector<1x16x128xf32> to vector<16x128xf32>
    %c1_52 = arith.constant 1 : index
    %c0_53 = arith.constant 0 : index
    %c0_54 = arith.constant 0 : index
    %137 = vector.load %arg5[%c1_52, %c0_53, %c0_54] : memref<2x1x128xi32, #tpu.memory_space<vmem>>, vector<1x1x128xi32>
    %138 = vector.shape_cast %137 : vector<1x1x128xi32> to vector<1x128xi32>
    %c0_i32_55 = arith.constant 0 : i32
    %139 = vector.broadcast %c0_i32_55 : i32 to vector<1x128xi32>
    %140 = arith.cmpi sgt, %138, %139 : vector<1x128xi32>
    %141 = arith.extui %140 : vector<1x128xi1> to vector<1x128xi32>
    %142 = arith.sitofp %141 : vector<1x128xi32> to vector<1x128xf32>
    %cst_56 = arith.constant dense<0.000000e+00> : vector<1xf32>
    %143 = vector.multi_reduction <add>, %142, %cst_56 [1] : vector<1x128xf32> to vector<1xf32>
    %144 = vector.shape_cast %143 : vector<1xf32> to vector<1x1xf32>
    %145 = vector.extract_strided_slice %134 {offsets = [0, 0], sizes = [2, 128], strides = [1, 1]} : vector<4x128xf32> to vector<2x128xf32>
    %146 = arith.subf %145, %2 : vector<2x128xf32>
    %cst_57 = arith.constant 1.000000e+01 : f32
    %147 = vector.broadcast %cst_57 : f32 to vector<2x128xf32>
    %148 = arith.mulf %147, %146 : vector<2x128xf32>
    %149 = arith.divf %148, %3 : vector<2x128xf32>
    %150 = vector.extract_strided_slice %134 {offsets = [2, 0], sizes = [2, 128], strides = [1, 1]} : vector<4x128xf32> to vector<2x128xf32>
    %151 = arith.divf %150, %3 : vector<2x128xf32>
    %152 = math.log %151 : vector<2x128xf32>
    %cst_58 = arith.constant 5.000000e+00 : f32
    %153 = vector.broadcast %cst_58 : f32 to vector<2x128xf32>
    %154 = arith.mulf %153, %152 : vector<2x128xf32>
    %155 = vector.extract_strided_slice %132 {offsets = [0, 0], sizes = [2, 128], strides = [1, 1]} : vector<4x128xf32> to vector<2x128xf32>
    %156 = arith.subf %155, %149 : vector<2x128xf32>
    %157 = math.absf %156 : vector<2x128xf32>
    %cst_59 = arith.constant 1.000000e+00 : f32
    %158 = vector.broadcast %cst_59 : f32 to vector<2x128xf32>
    %159 = arith.cmpf olt, %157, %158 : vector<2x128xf32>
    %cst_60 = arith.constant 5.000000e-01 : f32
    %160 = vector.broadcast %cst_60 : f32 to vector<2x128xf32>
    %161 = arith.mulf %160, %156 : vector<2x128xf32>
    %162 = arith.mulf %161, %156 : vector<2x128xf32>
    %cst_61 = arith.constant 5.000000e-01 : f32
    %163 = vector.broadcast %cst_61 : f32 to vector<2x128xf32>
    %164 = arith.subf %157, %163 : vector<2x128xf32>
    %165 = arith.select %159, %162, %164 : vector<2x128xi1>, vector<2x128xf32>
    %cst_62 = arith.constant dense<0.000000e+00> : vector<128xf32>
    %166 = vector.multi_reduction <add>, %165, %cst_62 [0] : vector<2x128xf32> to vector<128xf32>
    %167 = vector.shape_cast %166 : vector<128xf32> to vector<1x128xf32>
    %168 = vector.extract_strided_slice %132 {offsets = [2, 0], sizes = [2, 128], strides = [1, 1]} : vector<4x128xf32> to vector<2x128xf32>
    %169 = arith.subf %168, %154 : vector<2x128xf32>
    %170 = math.absf %169 : vector<2x128xf32>
    %cst_63 = arith.constant 1.000000e+00 : f32
    %171 = vector.broadcast %cst_63 : f32 to vector<2x128xf32>
    %172 = arith.cmpf olt, %170, %171 : vector<2x128xf32>
    %cst_64 = arith.constant 5.000000e-01 : f32
    %173 = vector.broadcast %cst_64 : f32 to vector<2x128xf32>
    %174 = arith.mulf %173, %169 : vector<2x128xf32>
    %175 = arith.mulf %174, %169 : vector<2x128xf32>
    %cst_65 = arith.constant 5.000000e-01 : f32
    %176 = vector.broadcast %cst_65 : f32 to vector<2x128xf32>
    %177 = arith.subf %170, %176 : vector<2x128xf32>
    %178 = arith.select %172, %175, %177 : vector<2x128xi1>, vector<2x128xf32>
    %cst_66 = arith.constant dense<0.000000e+00> : vector<128xf32>
    %179 = vector.multi_reduction <add>, %178, %cst_66 [0] : vector<2x128xf32> to vector<128xf32>
    %180 = vector.shape_cast %179 : vector<128xf32> to vector<1x128xf32>
    %181 = arith.addf %167, %180 : vector<1x128xf32>
    %182 = arith.mulf %142, %181 : vector<1x128xf32>
    %cst_67 = arith.constant dense<0.000000e+00> : vector<1xf32>
    %183 = vector.multi_reduction <add>, %182, %cst_67 [1] : vector<1x128xf32> to vector<1xf32>
    %184 = vector.shape_cast %183 : vector<1xf32> to vector<1x1xf32>
    %cst_68 = arith.constant dense<0xFF800000> : vector<128xf32>
    %185 = vector.multi_reduction <maximumf>, %136, %cst_68 [0] : vector<16x128xf32> to vector<128xf32>
    %186 = vector.shape_cast %185 : vector<128xf32> to vector<1x128xf32>
    %187 = vector.broadcast %186 : vector<1x128xf32> to vector<16x128xf32>
    %188 = arith.subf %136, %187 : vector<16x128xf32>
    %189 = math.exp %188 : vector<16x128xf32>
    %cst_69 = arith.constant dense<0.000000e+00> : vector<128xf32>
    %190 = vector.multi_reduction <add>, %189, %cst_69 [0] : vector<16x128xf32> to vector<128xf32>
    %191 = vector.shape_cast %190 : vector<128xf32> to vector<1x128xf32>
    %192 = math.log %191 : vector<1x128xf32>
    %193 = arith.addf %186, %192 : vector<1x128xf32>
    %194 = vector.broadcast %138 : vector<1x128xi32> to vector<16x128xi32>
    %195 = arith.cmpi eq, %4, %194 : vector<16x128xi32>
    %cst_70 = arith.constant 0.000000e+00 : f32
    %196 = vector.broadcast %cst_70 : f32 to vector<16x128xf32>
    %197 = arith.select %195, %136, %196 : vector<16x128xi1>, vector<16x128xf32>
    %cst_71 = arith.constant dense<0.000000e+00> : vector<128xf32>
    %198 = vector.multi_reduction <add>, %197, %cst_71 [0] : vector<16x128xf32> to vector<128xf32>
    %199 = vector.shape_cast %198 : vector<128xf32> to vector<1x128xf32>
    %200 = arith.subf %193, %199 : vector<1x128xf32>
    %cst_72 = arith.constant 0.000000e+00 : f32
    %201 = vector.broadcast %cst_72 : f32 to vector<1x128xf32>
    %202 = arith.select %140, %201, %200 : vector<1x128xi1>, vector<1x128xf32>
    %cst_73 = arith.constant 0.000000e+00 : f32
    %203 = vector.broadcast %cst_73 : f32 to vector<8x128xf32>
    %cst_74 = arith.constant 0.000000e+00 : f32
    %204 = vector.shape_cast %202 : vector<1x128xf32> to vector<1x128xf32>
    %205 = vector.broadcast %204 : vector<1x128xf32> to vector<128x128xf32>
    %206 = vector.broadcast %cst_74 : f32 to vector<128x128xf32>
    %207 = arith.select %7, %205, %206 : vector<128x128xi1>, vector<128x128xf32>
    %cst_75 = arith.constant dense<0.000000e+00> : vector<128xf32>
    %208 = vector.multi_reduction <add>, %207, %cst_75 [1] : vector<128x128xf32> to vector<128xf32>
    %209 = vector.shape_cast %208 : vector<128xf32> to vector<128x1xf32>
    %210 = vector.broadcast %209 : vector<128x1xf32> to vector<128x128xf32>
    %211 = vector.broadcast %202 : vector<1x128xf32> to vector<128x128xf32>
    %212 = arith.cmpf ogt, %210, %211 : vector<128x128xf32>
    %213 = vector.broadcast %209 : vector<128x1xf32> to vector<128x128xf32>
    %214 = vector.broadcast %202 : vector<1x128xf32> to vector<128x128xf32>
    %215 = arith.cmpf oeq, %213, %214 : vector<128x128xf32>
    %c0_i32_76 = arith.constant 0 : i32
    %216 = vector.broadcast %c0_i32_76 : i32 to vector<128x128xi32>
    %217 = arith.cmpi sgt, %10, %216 : vector<128x128xi32>
    %218 = arith.andi %215, %217 : vector<128x128xi1>
    %219 = arith.ori %212, %218 : vector<128x128xi1>
    %220 = arith.extui %219 : vector<128x128xi1> to vector<128x128xi32>
    %221 = arith.sitofp %220 : vector<128x128xi32> to vector<128x128xf32>
    %222 = arith.truncf %221 : vector<128x128xf32> to vector<128x128xbf16>
    %cst_77 = arith.constant dense<0.000000e+00> : vector<8x128xf32>
    %223 = tpu.matmul %11, %222, %cst_77 {dimension_numbers = #tpu.dot_dimension_numbers<[1], [0], [0], [1], [0, 0, 1, 1], [], []>} : vector<8x128xbf16>, vector<128x128xbf16>, vector<8x128xf32> -> vector<8x128xf32>
    %224 = arith.addf %203, %223 : vector<8x128xf32>
    %225 = vector.extract_strided_slice %224 {offsets = [0, 0], sizes = [1, 128], strides = [1, 1]} : vector<8x128xf32> to vector<1x128xf32>
    %cst_78 = arith.constant 3.000000e+00 : f32
    %226 = vector.broadcast %cst_78 : f32 to vector<1x1xf32>
    %227 = arith.mulf %226, %144 : vector<1x1xf32>
    %cst_79 = arith.constant 1.280000e+02 : f32
    %228 = vector.broadcast %cst_79 : f32 to vector<1x1xf32>
    %229 = arith.minimumf %227, %228 : vector<1x1xf32>
    %230 = vector.broadcast %229 : vector<1x1xf32> to vector<1x128xf32>
    %231 = arith.cmpf olt, %225, %230 : vector<1x128xf32>
    %232 = arith.extui %231 : vector<1x128xi1> to vector<1x128xi32>
    %233 = arith.sitofp %232 : vector<1x128xi32> to vector<1x128xf32>
    %234 = arith.addf %142, %233 : vector<1x128xf32>
    %235 = arith.mulf %200, %234 : vector<1x128xf32>
    %cst_80 = arith.constant dense<0.000000e+00> : vector<1xf32>
    %236 = vector.multi_reduction <add>, %235, %cst_80 [1] : vector<1x128xf32> to vector<1xf32>
    %237 = vector.shape_cast %236 : vector<1xf32> to vector<1x1xf32>
    %238 = arith.addf %237, %184 : vector<1x1xf32>
    %cst_81 = arith.constant 0.000000e+00 : f32
    %239 = vector.broadcast %cst_81 : f32 to vector<1x1xf32>
    %240 = arith.cmpf ogt, %144, %239 : vector<1x1xf32>
    %241 = arith.extui %240 : vector<1x1xi1> to vector<1x1xi32>
    %242 = arith.sitofp %241 : vector<1x1xi32> to vector<1x1xf32>
    %243 = arith.mulf %238, %242 : vector<1x1xf32>
    %cst_82 = arith.constant 9.99999997E-7 : f32
    %244 = vector.broadcast %cst_82 : f32 to vector<1x1xf32>
    %245 = arith.maximumf %144, %244 : vector<1x1xf32>
    %246 = arith.divf %243, %245 : vector<1x1xf32>
    %c1_83 = arith.constant 1 : index
    %c0_84 = arith.constant 0 : index
    %c0_85 = arith.constant 0 : index
    %247 = vector.load %arg6[%c1_83, %c0_84, %c0_85] : memref<2x1x1xf32, #tpu.memory_space<vmem>>, vector<1x1x1xf32>
    %248 = vector.shape_cast %247 : vector<1x1x1xf32> to vector<1x1xf32>
    %249 = vector.shape_cast %246 : vector<1x1xf32> to vector<1x1x1xf32>
    tpu.vector_store %arg6[%c1_83, %c0_84, %c0_85], %249 {strides = array<i32>} : memref<2x1x1xf32, #tpu.memory_space<vmem>>, vector<1x1x1xf32>,
    return
  }
  func.func @transform_0(%arg0: i32) -> (i32, i32, i32) {
    %c0_i32 = arith.constant 0 : i32
    %c0_i32_0 = arith.constant 0 : i32
    %c0_i32_1 = arith.constant 0 : i32
    %c0_i32_2 = arith.constant 0 : i32
    return %c0_i32, %c0_i32_0, %c0_i32_1 : i32, i32, i32
  }
  func.func @transform_1(%arg0: i32) -> (i32, i32, i32) {
    %c0_i32 = arith.constant 0 : i32
    %c0_i32_0 = arith.constant 0 : i32
    %c0_i32_1 = arith.constant 0 : i32
    return %arg0, %c0_i32, %c0_i32_0 : i32, i32, i32
  }
  func.func @transform_2(%arg0: i32) -> (i32, i32, i32) {
    %c0_i32 = arith.constant 0 : i32
    %c0_i32_0 = arith.constant 0 : i32
    %c0_i32_1 = arith.constant 0 : i32
    return %arg0, %c0_i32, %c0_i32_0 : i32, i32, i32
  }
  func.func @transform_3(%arg0: i32) -> (i32, i32, i32) {
    %c0_i32 = arith.constant 0 : i32
    %c0_i32_0 = arith.constant 0 : i32
    %c0_i32_1 = arith.constant 0 : i32
    return %arg0, %c0_i32, %c0_i32_0 : i32, i32, i32
  }
  func.func @transform_4(%arg0: i32) -> (i32, i32, i32) {
    %c0_i32 = arith.constant 0 : i32
    %c0_i32_0 = arith.constant 0 : i32
    %c0_i32_1 = arith.constant 0 : i32
    return %arg0, %c0_i32, %c0_i32_0 : i32, i32, i32
  }
  func.func @transform_5(%arg0: i32) -> (i32, i32, i32) {
    %c0_i32 = arith.constant 0 : i32
    %c0_i32_0 = arith.constant 0 : i32
    %c0_i32_1 = arith.constant 0 : i32
    return %arg0, %c0_i32, %c0_i32_0 : i32, i32, i32
  }
}

</mosaic_0001>

<llo_original>
// kernel: tpu_custom_call.1
$region0: #{tpu_custom_call.1}
  #allocation0 [shape = 'u32[]', space=smem, size = 0x4, offset = 0x4, fixed_abs, tag = 'smem constant byte address 0x4 - core index']
  #allocation1 [shape = 'u32[144,128]{1,0:T(1,128)}', space=vmem, size = 0x12000, scoped, tag = 'internal scratch']
  %s0 = inlined_call_operand.hbm [shape: f32[1,4,128], index: 0, kind: input, shape index: {}]
  %s1 = inlined_call_operand.hbm [shape: f32[2,4,128], index: 1, kind: input, shape index: {}]
  %s2 = inlined_call_operand.hbm [shape: f32[2,16,128], index: 2, kind: input, shape index: {}]
  %s3 = inlined_call_operand.vmem [shape: f32[2,4,128], index: 3, kind: input, shape index: {}]
  %s4 = inlined_call_operand.vmem [shape: s32[2,1,128], index: 4, kind: input, shape index: {}]
  %s5 = inlined_call_operand.vmem [shape: f32[2,1,1], index: 5, kind: output, shape index: {}]
  %s6 = sld [smem:[#allocation0]]
  $region42: #{tpu_custom_call.1} parent=0
    _
  %s8 = ssub.s32 1, %s6
  %s9 = scalar_select 0, %s8, %s6
  $region1: #{tpu_custom_call.1} parent=0
    #allocation2 [shape = 'u8[2048]{0}', space=vmem, size = 0x800, scoped, tag = 'input window, operand 0, single buffered']
    #allocation3 [shape = 's32[1]{0}', space=sflag, size = 0x4, scoped, tag = 'scoped memory for tpu_custom_call.1']
    #allocation4 [shape = 'u8[4096]{0}', space=vmem, size = 0x1000, scoped, tag = 'input window, operand 1, single buffered']
    #allocation5 [shape = 's32[1]{0}', space=sflag, size = 0x4, scoped, tag = 'scoped memory for tpu_custom_call.1']
    #allocation6 [shape = 'u8[16384]{0}', space=vmem, size = 0x4000, scoped, tag = 'input window, operand 2, single buffered']
    %10 = vsyncpa [#allocation3], 0
    %11 = vsyncpa [#allocation5], 0
    // Predicated region
    $region2: #{tpu_custom_call.1} parent=1 // pred_check
      _
    $region3: #{tpu_custom_call.1} parent=1 // pred_check_branch
      %13 = sbr.rel (0) target = $region5
    $region4: #{tpu_custom_call.1} parent=1 // pred_region
      %s15 = ssub.s32 64, 64
      %16 = vsyncadd [#allocation3], %s15
      %s18 = sshll.u32 [#allocation2], 4
      %s19 = int_to_ptr.vmem [resolvable:$true] %s18
      %21 = dma.hbm_to_vmem [thread:$0]  %s0, 64, %s19, [#allocation3]
    $region5: #{tpu_custom_call.1} parent=1 // pred_fallthru
      _
    // Predicated region
    $region6: #{tpu_custom_call.1} parent=1 // pred_check
      _
    $region7: #{tpu_custom_call.1} parent=1 // pred_check_branch
      %23 = sbr.rel (0) target = $region9
    $region8: #{tpu_custom_call.1} parent=1 // pred_region
      %s25 = ssub.s32 128, 128
      %26 = vsyncadd [#allocation5], %s25
      %s27 = sshll.u32 [#allocation4], 4
      %s28 = int_to_ptr.vmem [resolvable:$true] %s27
      %33 = dma.hbm_to_vmem [thread:$0]  %s1, 128, %s28, [#allocation5], 64, 64, 4
    $region9: #{tpu_custom_call.1} parent=1 // pred_fallthru
      _
    // Predicated region
    $region10: #{tpu_custom_call.1} parent=1 // pred_check
      _
    $region11: #{tpu_custom_call.1} parent=1 // pred_check_branch
      %35 = sbr.rel (0) target = $region13
    $region12: #{tpu_custom_call.1} parent=1 // pred_region
      %s37 = ssub.s32 512, 512
      %38 = vsyncadd [#allocation5], %s37
      %s39 = sshll.u32 [#allocation6], 4
      %s40 = int_to_ptr.vmem [resolvable:$true] %s39
      %45 = dma.hbm_to_vmem [thread:$0]  %s2, 512, %s40, [#allocation5], 128, 128, 8
    $region13: #{tpu_custom_call.1} parent=1 // pred_fallthru
      _
    // Predicated region
    $region14: #{tpu_custom_call.1} parent=1 // pred_check
      _
    $region15: #{tpu_custom_call.1} parent=1 // pred_check_branch
      %47 = sbr.rel (0) target = $region17
    $region16: #{tpu_custom_call.1} parent=1 // pred_region
      _
    $region17: #{tpu_custom_call.1} parent=1 // pred_fallthru
      _
    // Predicated region
    $region18: #{tpu_custom_call.1} parent=1 // pred_check
      _
    $region19: #{tpu_custom_call.1} parent=1 // pred_check_branch
      %49 = sbr.rel (0) target = $region21
    $region20: #{tpu_custom_call.1} parent=1 // pred_region
      _
    $region21: #{tpu_custom_call.1} parent=1 // pred_fallthru
      _
    // Predicated region
    $region22: #{tpu_custom_call.1} parent=1 // pred_check
      _
    $region23: #{tpu_custom_call.1} parent=1 // pred_check_branch
      %51 = sbr.rel (0) target = $region25
    $region24: #{tpu_custom_call.1} parent=1 // pred_region
      %52 = dma.done [#allocation3], 64
    $region25: #{tpu_custom_call.1} parent=1 // pred_fallthru
      _
    // Predicated region
    $region26: #{tpu_custom_call.1} parent=1 // pred_check
      _
    $region27: #{tpu_custom_call.1} parent=1 // pred_check_branch
      %54 = sbr.rel (0) target = $region29
    $region28: #{tpu_custom_call.1} parent=1 // pred_region
      %55 = dma.done [#allocation5], 128
    $region29: #{tpu_custom_call.1} parent=1 // pred_fallthru
      _
    // Predicated region
    $region30: #{tpu_custom_call.1} parent=1 // pred_check
      _
    $region31: #{tpu_custom_call.1} parent=1 // pred_check_branch
      %57 = sbr.rel (0) target = $region33
    $region32: #{tpu_custom_call.1} parent=1 // pred_region
      %58 = dma.done [#allocation5], 512
    $region33: #{tpu_custom_call.1} parent=1 // pred_fallthru
      _
    %v61 = vld [vmem:[#allocation2] sm:$0xf]
    %v62 = vlaneseq
    %v63 = vshrl.u32 %v62, 7
    %v64 = vadd.s32 %v63, 8
    %v65 = vadd.s32 %v63, 16
    %v66 = vadd.s32 %v63, 24
    %v67 = vadd.s32 %v63, 32
    %v68 = vadd.s32 %v63, 40
    %v69 = vadd.s32 %v63, 48
    %v70 = vadd.s32 %v63, 56
    %v71 = vadd.s32 %v63, 64
    %v72 = vadd.s32 %v63, 72
    %v73 = vadd.s32 %v63, 80
    %v74 = vadd.s32 %v63, 88
    %v75 = vadd.s32 %v63, 96
    %v76 = vadd.s32 %v63, 104
    %v77 = vadd.s32 %v63, 112
    %v78 = vadd.s32 %v63, 120
    %v79 = vlaneseq
    %v80 = vand.u32 %v79, 127
    %vm81 = vcmp.eq.s32.totalorder %v63, %v80
    %vm82 = vcmp.eq.s32.totalorder %v64, %v80
    %vm83 = vcmp.eq.s32.totalorder %v65, %v80
    %vm84 = vcmp.eq.s32.totalorder %v66, %v80
    %vm85 = vcmp.eq.s32.totalorder %v67, %v80
    %vm86 = vcmp.eq.s32.totalorder %v68, %v80
    %vm87 = vcmp.eq.s32.totalorder %v69, %v80
    %vm88 = vcmp.eq.s32.totalorder %v70, %v80
    %vm89 = vcmp.eq.s32.totalorder %v71, %v80
    %vm90 = vcmp.eq.s32.totalorder %v72, %v80
    %vm91 = vcmp.eq.s32.totalorder %v73, %v80
    %vm92 = vcmp.eq.s32.totalorder %v74, %v80
    %vm93 = vcmp.eq.s32.totalorder %v75, %v80
    %vm94 = vcmp.eq.s32.totalorder %v76, %v80
    %vm95 = vcmp.eq.s32.totalorder %v77, %v80
    %vm96 = vcmp.eq.s32.totalorder %v78, %v80
    %v97 = vsub.s32 %v80, %v63
    %v98 = vsub.s32 %v80, %v64
    %v99 = vsub.s32 %v80, %v65
    %v100 = vsub.s32 %v80, %v66
    %v101 = vsub.s32 %v80, %v67
    %v102 = vsub.s32 %v80, %v68
    %v103 = vsub.s32 %v80, %v69
    %v104 = vsub.s32 %v80, %v70
    %v105 = vsub.s32 %v80, %v71
    %v106 = vsub.s32 %v80, %v72
    %v107 = vsub.s32 %v80, %v73
    %v108 = vsub.s32 %v80, %v74
    %v109 = vsub.s32 %v80, %v75
    %v110 = vsub.s32 %v80, %v76
    %v111 = vsub.s32 %v80, %v77
    %v112 = vsub.s32 %v80, %v78
    %v113 = vld [vmem:[#allocation4] sm:$0xf]
    %v114 = vld [vmem:[%s3] sm:$0xf]
    %v115 = vld [vmem:[#allocation6] sm:$0xff]
    %v116 = vld [vmem:[#allocation6 + $0x8] sm:$0xff]
    %v117 = vld [vmem:[%s4] sm:$0x1]
    %vm118 = vcmp.gt.s32.totalorder %v117, 0
    %v119 = vsel %vm118, 1, 0
    %v120 = vcvt.s32.f32 %v119
    %vm121 = vcmask 1040384
    %v122 = vsel %vm121, %v120, 0.0
    %123 = vadd.xlane.f32.xlu0 %v122
    %v124 = vpop.xlane.xlu0 %123
    %v125 = vsub.f32 %v114, %v61
    %v126 = vmul.f32 %v125, 10.0
    %v128 = vrot.slane %v61, 2
    %v130 = vrcp.pop %v128
    %v131 = vmul.f32 %v126, %v130
    %v132 = vrcp.pop %v61
    %v133 = vmul.f32 %v114, %v132
    %v134 = vlog2.pop %v133
    %v135 = vmul.f32 %v134, 0.6931472
    %v136 = vmul.f32 %v135, 5.0
    %v137 = vsub.f32 %v113, %v131
    %v138 = vand.u32 2147483647, %v137
    %vm139 = vcmp.lt.f32.partialorder %v138, 1.0
    %v140 = vmul.f32 %v137, 0.5
    %v141 = vmul.f32 %v140, %v137
    %v142 = vsub.f32 %v138, 0.5
    %v143 = vsel %vm139, %v141, %v142
    %vm144 = vcmask 1041408
    %v145 = vsel %vm144, %v143, 0.0
    %v146 = vrot.slane %v145, 4
    %v147 = vadd.f32 %v145, %v146
    %v148 = vrot.slane %v147, 2
    %v149 = vadd.f32 %v147, %v148
    %v150 = vrot.slane %v149, 1
    %v151 = vadd.f32 %v149, %v150
    %v152 = vsub.f32 %v113, %v136
    %v153 = vand.u32 2147483647, %v152
    %vm154 = vcmp.lt.f32.partialorder %v153, 1.0
    %v155 = vmul.f32 %v152, 0.5
    %v156 = vmul.f32 %v155, %v152
    %v157 = vsub.f32 %v153, 0.5
    %v158 = vsel %vm154, %v156, %v157
    %v160 = vrot.slane %v158, 2
    %v162 = vsel %vm144, %v160, 0.0
    %v163 = vrot.slane %v162, 4
    %v164 = vadd.f32 %v162, %v163
    %v165 = vrot.slane %v164, 2
    %v166 = vadd.f32 %v164, %v165
    %v167 = vrot.slane %v166, 1
    %v168 = vadd.f32 %v166, %v167
    %v169 = vadd.f32 %v151, %v168
    %v170 = vmul.f32 %v120, %v169
    %v171 = vsel %vm121, %v170, 0.0
    %172 = vadd.xlane.f32.xlu0 %v171
    %v173 = vpop.xlane.xlu0 %172
    %v174 = vmax.f32 %v115, %v116
    %v175 = vrot.slane %v174, 4
    %v176 = vmax.f32 %v174, %v175
    %v177 = vrot.slane %v176, 2
    %v178 = vmax.f32 %v176, %v177
    %v179 = vrot.slane %v178, 1
    %v180 = vmax.f32 %v178, %v179
    %v181 = vsub.f32 %v115, %v180
    %v182 = vsub.f32 %v116, %v180
    %v183 = vmul.f32 %v181, 1.442695
    %v184 = vpow.pop %v183
    %v185 = vmul.f32 %v182, 1.442695
    %v186 = vpow.pop %v185
    %v187 = vadd.f32 %v184, %v186
    %v188 = vrot.slane %v187, 4
    %v189 = vadd.f32 %v187, %v188
    %v190 = vrot.slane %v189, 2
    %v191 = vadd.f32 %v189, %v190
    %v192 = vrot.slane %v191, 1
    %v193 = vadd.f32 %v191, %v192
    %v194 = vlog2.pop %v193
    %v195 = vmul.f32 %v194, 0.6931472
    %v196 = vadd.f32 %v180, %v195
    %v197 = vlaneseq
    %v198 = vshrl.u32 %v197, 7
    %v199 = vsub.s32 0, %v198
    %v200 = vrot.slane %v117, %v199
    %vm201 = vcmp.eq.s32.totalorder %v63, %v200
    %vm202 = vcmp.eq.s32.totalorder %v64, %v200
    %v203 = vsel %vm201, %v115, 0.0
    %v204 = vsel %vm202, %v116, 0.0
    %v205 = vadd.f32 %v203, %v204
    %v206 = vrot.slane %v205, 4
    %v207 = vadd.f32 %v205, %v206
    %v208 = vrot.slane %v207, 2
    %v209 = vadd.f32 %v207, %v208
    %v210 = vrot.slane %v209, 1
    %v211 = vadd.f32 %v209, %v210
    %v212 = vsub.f32 %v196, %v211
    %v213 = vsel %vm118, 0.0, %v212
    %v215 = vlaneseq
    %v216 = vshrl.u32 %v215, 7
    %v217 = vsub.s32 0, %v216
    %v218 = vrot.slane %v213, %v217
    %v220 = vsel %vm81, %v218, 0.0
    %v221 = vsel %vm82, %v218, 0.0
    %v222 = vsel %vm83, %v218, 0.0
    %v223 = vsel %vm84, %v218, 0.0
    %v224 = vsel %vm85, %v218, 0.0
    %v225 = vsel %vm86, %v218, 0.0
    %v226 = vsel %vm87, %v218, 0.0
    %v227 = vsel %vm88, %v218, 0.0
    %v228 = vsel %vm89, %v218, 0.0
    %v229 = vsel %vm90, %v218, 0.0
    %v230 = vsel %vm91, %v218, 0.0
    %v231 = vsel %vm92, %v218, 0.0
    %v232 = vsel %vm93, %v218, 0.0
    %v233 = vsel %vm94, %v218, 0.0
    %v234 = vsel %vm95, %v218, 0.0
    %v235 = vsel %vm96, %v218, 0.0
    %236 = vadd.xlane.f32.xlu0 %v220
    %v237 = vpop.xlane.xlu0 %236
    %238 = vadd.xlane.f32.xlu0 %v221
    %v239 = vpop.xlane.xlu0 %238
    %240 = vadd.xlane.f32.xlu0 %v222
    %v241 = vpop.xlane.xlu0 %240
    %242 = vadd.xlane.f32.xlu0 %v223
    %v243 = vpop.xlane.xlu0 %242
    %244 = vadd.xlane.f32.xlu0 %v224
    %v245 = vpop.xlane.xlu0 %244
    %246 = vadd.xlane.f32.xlu0 %v225
    %v247 = vpop.xlane.xlu0 %246
    %248 = vadd.xlane.f32.xlu0 %v226
    %v249 = vpop.xlane.xlu0 %248
    %250 = vadd.xlane.f32.xlu0 %v227
    %v251 = vpop.xlane.xlu0 %250
    %252 = vadd.xlane.f32.xlu0 %v228
    %v253 = vpop.xlane.xlu0 %252
    %254 = vadd.xlane.f32.xlu0 %v229
    %v255 = vpop.xlane.xlu0 %254
    %256 = vadd.xlane.f32.xlu0 %v230
    %v257 = vpop.xlane.xlu0 %256
    %258 = vadd.xlane.f32.xlu0 %v231
    %v259 = vpop.xlane.xlu0 %258
    %260 = vadd.xlane.f32.xlu0 %v232
    %v261 = vpop.xlane.xlu0 %260
    %262 = vadd.xlane.f32.xlu0 %v233
    %v263 = vpop.xlane.xlu0 %262
    %264 = vadd.xlane.f32.xlu0 %v234
    %v265 = vpop.xlane.xlu0 %264
    %266 = vadd.xlane.f32.xlu0 %v235
    %v267 = vpop.xlane.xlu0 %266
    %vm268 = vcmp.gt.f32.partialorder %v237, %v218
    %vm269 = vcmp.gt.f32.partialorder %v239, %v218
    %vm270 = vcmp.gt.f32.partialorder %v241, %v218
    %vm271 = vcmp.gt.f32.partialorder %v243, %v218
    %vm272 = vcmp.gt.f32.partialorder %v245, %v218
    %vm273 = vcmp.gt.f32.partialorder %v247, %v218
    %vm274 = vcmp.gt.f32.partialorder %v249, %v218
    %vm275 = vcmp.gt.f32.partialorder %v251, %v218
    %vm276 = vcmp.gt.f32.partialorder %v253, %v218
    %vm277 = vcmp.gt.f32.partialorder %v255, %v218
    %vm278 = vcmp.gt.f32.partialorder %v257, %v218
    %vm279 = vcmp.gt.f32.partialorder %v259, %v218
    %vm280 = vcmp.gt.f32.partialorder %v261, %v218
    %vm281 = vcmp.gt.f32.partialorder %v263, %v218
    %vm282 = vcmp.gt.f32.partialorder %v265, %v218
    %vm283 = vcmp.gt.f32.partialorder %v267, %v218
    %vm284 = vcmp.eq.f32.partialorder %v237, %v218
    %vm285 = vcmp.eq.f32.partialorder %v239, %v218
    %vm286 = vcmp.eq.f32.partialorder %v241, %v218
    %vm287 = vcmp.eq.f32.partialorder %v243, %v218
    %vm288 = vcmp.eq.f32.partialorder %v245, %v218
    %vm289 = vcmp.eq.f32.partialorder %v247, %v218
    %vm290 = vcmp.eq.f32.partialorder %v249, %v218
    %vm291 = vcmp.eq.f32.partialorder %v251, %v218
    %vm292 = vcmp.eq.f32.partialorder %v253, %v218
    %vm293 = vcmp.eq.f32.partialorder %v255, %v218
    %vm294 = vcmp.eq.f32.partialorder %v257, %v218
    %vm295 = vcmp.eq.f32.partialorder %v259, %v218
    %vm296 = vcmp.eq.f32.partialorder %v261, %v218
    %vm297 = vcmp.eq.f32.partialorder %v263, %v218
    %vm298 = vcmp.eq.f32.partialorder %v265, %v218
    %vm299 = vcmp.eq.f32.partialorder %v267, %v218
    %vm300 = vcmp.gt.s32.totalorder %v97, 0
    %vm301 = vcmp.gt.s32.totalorder %v98, 0
    %vm302 = vcmp.gt.s32.totalorder %v99, 0
    %vm303 = vcmp.gt.s32.totalorder %v100, 0
    %vm304 = vcmp.gt.s32.totalorder %v101, 0
    %vm305 = vcmp.gt.s32.totalorder %v102, 0
    %vm306 = vcmp.gt.s32.totalorder %v103, 0
    %vm307 = vcmp.gt.s32.totalorder %v104, 0
    %vm308 = vcmp.gt.s32.totalorder %v105, 0
    %vm309 = vcmp.gt.s32.totalorder %v106, 0
    %vm310 = vcmp.gt.s32.totalorder %v107, 0
    %vm311 = vcmp.gt.s32.totalorder %v108, 0
    %vm312 = vcmp.gt.s32.totalorder %v109, 0
    %vm313 = vcmp.gt.s32.totalorder %v110, 0
    %vm314 = vcmp.gt.s32.totalorder %v111, 0
    %vm315 = vcmp.gt.s32.totalorder %v112, 0
    %vm316 = vmand %vm284, %vm300
    %vm317 = vmand %vm285, %vm301
    %vm318 = vmand %vm286, %vm302
    %vm319 = vmand %vm287, %vm303
    %vm320 = vmand %vm288, %vm304
    %vm321 = vmand %vm289, %vm305
    %vm322 = vmand %vm290, %vm306
    %vm323 = vmand %vm291, %vm307
    %vm324 = vmand %vm292, %vm308
    %vm325 = vmand %vm293, %vm309
    %vm326 = vmand %vm294, %vm310
    %vm327 = vmand %vm295, %vm311
    %vm328 = vmand %vm296, %vm312
    %vm329 = vmand %vm297, %vm313
    %vm330 = vmand %vm298, %vm314
    %vm331 = vmand %vm299, %vm315
    %vm332 = vmor %vm268, %vm316
    %vm333 = vmor %vm269, %vm317
    %vm334 = vmor %vm270, %vm318
    %vm335 = vmor %vm271, %vm319
    %vm336 = vmor %vm272, %vm320
    %vm337 = vmor %vm273, %vm321
    %vm338 = vmor %vm274, %vm322
    %vm339 = vmor %vm275, %vm323
    %vm340 = vmor %vm276, %vm324
    %vm341 = vmor %vm277, %vm325
    %vm342 = vmor %vm278, %vm326
    %vm343 = vmor %vm279, %vm327
    %vm344 = vmor %vm280, %vm328
    %vm345 = vmor %vm281, %vm329
    %vm346 = vmor %vm282, %vm330
    %vm347 = vmor %vm283, %vm331
    %v348 = vsel %vm332, 1, 0
    %v349 = vsel %vm333, 1, 0
    %v350 = vsel %vm334, 1, 0
    %v351 = vsel %vm335, 1, 0
    %v352 = vsel %vm336, 1, 0
    %v353 = vsel %vm337, 1, 0
    %v354 = vsel %vm338, 1, 0
    %v355 = vsel %vm339, 1, 0
    %v356 = vsel %vm340, 1, 0
    %v357 = vsel %vm341, 1, 0
    %v358 = vsel %vm342, 1, 0
    %v359 = vsel %vm343, 1, 0
    %v360 = vsel %vm344, 1, 0
    %v361 = vsel %vm345, 1, 0
    %v362 = vsel %vm346, 1, 0
    %v363 = vsel %vm347, 1, 0
    %v364 = vcvt.s32.f32 %v348
    %v365 = vcvt.s32.f32 %v349
    %v366 = vcvt.s32.f32 %v350
    %v367 = vcvt.s32.f32 %v351
    %v368 = vcvt.s32.f32 %v352
    %v369 = vcvt.s32.f32 %v353
    %v370 = vcvt.s32.f32 %v354
    %v371 = vcvt.s32.f32 %v355
    %v372 = vcvt.s32.f32 %v356
    %v373 = vcvt.s32.f32 %v357
    %v374 = vcvt.s32.f32 %v358
    %v375 = vcvt.s32.f32 %v359
    %v376 = vcvt.s32.f32 %v360
    %v377 = vcvt.s32.f32 %v361
    %v378 = vcvt.s32.f32 %v362
    %v379 = vcvt.s32.f32 %v363
    %v380 = vpack.c.bf16 %v365, %v364
    %v381 = vpack.c.bf16 %v367, %v366
    %v382 = vpack.c.bf16 %v369, %v368
    %v383 = vpack.c.bf16 %v371, %v370
    %v384 = vpack.c.bf16 %v373, %v372
    %v385 = vpack.c.bf16 %v375, %v374
    %v386 = vpack.c.bf16 %v377, %v376
    %v387 = vpack.c.bf16 %v379, %v378
    %388 = vmatprep.subr.bf16.mxu0 0
    %389 = vmatpush1.bf16.msra.mxu0 %v380
    %390 = vmatprep.subr.bf16.mxu0 0
    %391 = vmatpush1.bf16.msra.mxu0 %v381
    %392 = vmatprep.subr.bf16.mxu0 0
    %393 = vmatpush1.bf16.msra.mxu0 %v382
    %394 = vmatprep.subr.bf16.mxu0 0
    %395 = vmatpush1.bf16.msra.mxu0 %v383
    %396 = vmatprep.subr.bf16.mxu0 0
    %397 = vmatpush1.bf16.msra.mxu0 %v384
    %398 = vmatprep.subr.bf16.mxu0 0
    %399 = vmatpush1.bf16.msra.mxu0 %v385
    %400 = vmatprep.subr.bf16.mxu0 0
    %401 = vmatpush1.bf16.msra.mxu0 %v386
    %402 = vmatprep.subr.bf16.mxu0 0
    %403 = vmatpush1.bf16.msra.mxu0 %v387
    %404 = vmatprep.subr.bf16.mxu0 0
    %405 = vmatpush1.bf16.msra.mxu0 0
    %406 = vmatprep.subr.bf16.mxu0 0
    %407 = vmatpush1.bf16.msra.mxu0 0
    %408 = vmatprep.subr.bf16.mxu0 0
    %409 = vmatpush1.bf16.msra.mxu0 0
    %410 = vmatprep.subr.bf16.mxu0 0
    %411 = vmatpush1.bf16.msra.mxu0 0
    %412 = vmatprep.subr.bf16.mxu0 0
    %413 = vmatpush1.bf16.msra.mxu0 0
    %414 = vmatprep.subr.bf16.mxu0 0
    %415 = vmatpush1.bf16.msra.mxu0 0
    %416 = vmatprep.subr.bf16.mxu0 0
    %417 = vmatpush1.bf16.msra.mxu0 0
    %418 = vmatprep.subr.bf16.mxu0 0
    %419 = vmatpush1.bf16.msra.mxu0 0
    %420 = vmatprep.mubr.bf16.mxu0 0
    %421 = vmatmul.mubr.bf16.gmra.mrb[0].mxu0 1065369472
    %v422 = vpop.f32.mrb[0].mxu0
    %v423 = vadd.f32 0.0, %v422
    %v424 = vpop.f32.mrb[0].mxu0
    %v425 = vpop.f32.mrb[0].mxu0
    %v426 = vpop.f32.mrb[0].mxu0
    %427 = vdwg.mxu0
    %v428 = vmul.f32 %v124, 3.0
    %v429 = vmin.f32 %v428, 128.0
    %vm430 = vcmp.lt.f32.partialorder %v423, %v429
    %v431 = vsel %vm430, 1, 0
    %v432 = vcvt.s32.f32 %v431
    %v433 = vadd.f32 %v120, %v432
    %v434 = vmul.f32 %v212, %v433
    %v435 = vsel %vm121, %v434, 0.0
    %436 = vadd.xlane.f32.xlu0 %v435
    %v437 = vpop.xlane.xlu0 %436
    %v438 = vadd.f32 %v437, %v173
    %vm439 = vcmp.gt.f32.partialorder %v124, 0.0
    %v440 = vsel %vm439, 1, 0
    %v441 = vcvt.s32.f32 %v440
    %v442 = vmul.f32 %v438, %v441
    %v443 = vmax.f32 %v124, 1e-06
    %v444 = vrcp.pop %v443
    %v445 = vmul.f32 %v442, %v444
    %vm446 = vcmask 0
    %447 = vst.msk [vmem:[%s5] sm:$0x1] %vm446, %v445
    %s448 = scalar_lea.vmem [#allocation4], 4
    %v449 = vld [vmem:[%s448] sm:$0xf]
    %s450 = scalar_lea.vmem %s3, 4
    %v451 = vld [vmem:[%s450] sm:$0xf]
    %s452 = scalar_lea.vmem [#allocation6], 16
    %v453 = vld [vmem:[%s452] sm:$0xff]
    %v454 = vld [vmem:[%s452 + $0x8] sm:$0xff]
    %s455 = scalar_lea.vmem %s4, 1
    %v456 = vld [vmem:[%s455] sm:$0x1]
    %vm457 = vcmp.gt.s32.totalorder %v456, 0
    %v458 = vsel %vm457, 1, 0
    %v459 = vcvt.s32.f32 %v458
    %v460 = vsel %vm121, %v459, 0.0
    %461 = vadd.xlane.f32.xlu0 %v460
    %v462 = vpop.xlane.xlu0 %461
    %v463 = vsub.f32 %v451, %v61
    %v464 = vmul.f32 %v463, 10.0
    %v465 = vmul.f32 %v464, %v130
    %v466 = vmul.f32 %v451, %v132
    %v467 = vlog2.pop %v466
    %v468 = vmul.f32 %v467, 0.6931472
    %v469 = vmul.f32 %v468, 5.0
    %v470 = vsub.f32 %v449, %v465
    %v471 = vand.u32 2147483647, %v470
    %vm472 = vcmp.lt.f32.partialorder %v471, 1.0
    %v473 = vmul.f32 %v470, 0.5
    %v474 = vmul.f32 %v473, %v470
    %v475 = vsub.f32 %v471, 0.5
    %v476 = vsel %vm472, %v474, %v475
    %v477 = vsel %vm144, %v476, 0.0
    %v478 = vrot.slane %v477, 4
    %v479 = vadd.f32 %v477, %v478
    %v480 = vrot.slane %v479, 2
    %v481 = vadd.f32 %v479, %v480
    %v482 = vrot.slane %v481, 1
    %v483 = vadd.f32 %v481, %v482
    %v484 = vsub.f32 %v449, %v469
    %v485 = vand.u32 2147483647, %v484
    %vm486 = vcmp.lt.f32.partialorder %v485, 1.0
    %v487 = vmul.f32 %v484, 0.5
    %v488 = vmul.f32 %v487, %v484
    %v489 = vsub.f32 %v485, 0.5
    %v490 = vsel %vm486, %v488, %v489
    %v492 = vrot.slane %v490, 2
    %v494 = vsel %vm144, %v492, 0.0
    %v495 = vrot.slane %v494, 4
    %v496 = vadd.f32 %v494, %v495
    %v497 = vrot.slane %v496, 2
    %v498 = vadd.f32 %v496, %v497
    %v499 = vrot.slane %v498, 1
    %v500 = vadd.f32 %v498, %v499
    %v501 = vadd.f32 %v483, %v500
    %v502 = vmul.f32 %v459, %v501
    %v503 = vsel %vm121, %v502, 0.0
    %504 = vadd.xlane.f32.xlu0 %v503
    %v505 = vpop.xlane.xlu0 %504
    %v506 = vmax.f32 %v453, %v454
    %v507 = vrot.slane %v506, 4
    %v508 = vmax.f32 %v506, %v507
    %v509 = vrot.slane %v508, 2
    %v510 = vmax.f32 %v508, %v509
    %v511 = vrot.slane %v510, 1
    %v512 = vmax.f32 %v510, %v511
    %v513 = vsub.f32 %v453, %v512
    %v514 = vsub.f32 %v454, %v512
    %v515 = vmul.f32 %v513, 1.442695
    %v516 = vpow.pop %v515
    %v517 = vmul.f32 %v514, 1.442695
    %v518 = vpow.pop %v517
    %v519 = vadd.f32 %v516, %v518
    %v520 = vrot.slane %v519, 4
    %v521 = vadd.f32 %v519, %v520
    %v522 = vrot.slane %v521, 2
    %v523 = vadd.f32 %v521, %v522
    %v524 = vrot.slane %v523, 1
    %v525 = vadd.f32 %v523, %v524
    %v526 = vlog2.pop %v525
    %v527 = vmul.f32 %v526, 0.6931472
    %v528 = vadd.f32 %v512, %v527
    %v529 = vlaneseq
    %v530 = vshrl.u32 %v529, 7
    %v531 = vsub.s32 0, %v530
    %v532 = vrot.slane %v456, %v531
    %vm533 = vcmp.eq.s32.totalorder %v63, %v532
    %vm534 = vcmp.eq.s32.totalorder %v64, %v532
    %v535 = vsel %vm533, %v453, 0.0
    %v536 = vsel %vm534, %v454, 0.0
    %v537 = vadd.f32 %v535, %v536
    %v538 = vrot.slane %v537, 4
    %v539 = vadd.f32 %v537, %v538
    %v540 = vrot.slane %v539, 2
    %v541 = vadd.f32 %v539, %v540
    %v542 = vrot.slane %v541, 1
    %v543 = vadd.f32 %v541, %v542
    %v544 = vsub.f32 %v528, %v543
    %v545 = vsel %vm457, 0.0, %v544
    %v547 = vlaneseq
    %v548 = vshrl.u32 %v547, 7
    %v549 = vsub.s32 0, %v548
    %v550 = vrot.slane %v545, %v549
    %v552 = vsel %vm81, %v550, 0.0
    %v553 = vsel %vm82, %v550, 0.0
    %v554 = vsel %vm83, %v550, 0.0
    %v555 = vsel %vm84, %v550, 0.0
    %v556 = vsel %vm85, %v550, 0.0
    %v557 = vsel %vm86, %v550, 0.0
    %v558 = vsel %vm87, %v550, 0.0
    %v559 = vsel %vm88, %v550, 0.0
    %v560 = vsel %vm89, %v550, 0.0
    %v561 = vsel %vm90, %v550, 0.0
    %v562 = vsel %vm91, %v550, 0.0
    %v563 = vsel %vm92, %v550, 0.0
    %v564 = vsel %vm93, %v550, 0.0
    %v565 = vsel %vm94, %v550, 0.0
    %v566 = vsel %vm95, %v550, 0.0
    %v567 = vsel %vm96, %v550, 0.0
    %568 = vadd.xlane.f32.xlu0 %v552
    %v569 = vpop.xlane.xlu0 %568
    %570 = vadd.xlane.f32.xlu0 %v553
    %v571 = vpop.xlane.xlu0 %570
    %572 = vadd.xlane.f32.xlu0 %v554
    %v573 = vpop.xlane.xlu0 %572
    %574 = vadd.xlane.f32.xlu0 %v555
    %v575 = vpop.xlane.xlu0 %574
    %576 = vadd.xlane.f32.xlu0 %v556
    %v577 = vpop.xlane.xlu0 %576
    %578 = vadd.xlane.f32.xlu0 %v557
    %v579 = vpop.xlane.xlu0 %578
    %580 = vadd.xlane.f32.xlu0 %v558
    %v581 = vpop.xlane.xlu0 %580
    %582 = vadd.xlane.f32.xlu0 %v559
    %v583 = vpop.xlane.xlu0 %582
    %584 = vadd.xlane.f32.xlu0 %v560
    %v585 = vpop.xlane.xlu0 %584
    %586 = vadd.xlane.f32.xlu0 %v561
    %v587 = vpop.xlane.xlu0 %586
    %588 = vadd.xlane.f32.xlu0 %v562
    %v589 = vpop.xlane.xlu0 %588
    %590 = vadd.xlane.f32.xlu0 %v563
    %v591 = vpop.xlane.xlu0 %590
    %592 = vadd.xlane.f32.xlu0 %v564
    %v593 = vpop.xlane.xlu0 %592
    %594 = vadd.xlane.f32.xlu0 %v565
    %v595 = vpop.xlane.xlu0 %594
    %596 = vadd.xlane.f32.xlu0 %v566
    %v597 = vpop.xlane.xlu0 %596
    %598 = vadd.xlane.f32.xlu0 %v567
    %v599 = vpop.xlane.xlu0 %598
    %vm600 = vcmp.gt.f32.partialorder %v569, %v550
    %vm601 = vcmp.gt.f32.partialorder %v571, %v550
    %vm602 = vcmp.gt.f32.partialorder %v573, %v550
    %vm603 = vcmp.gt.f32.partialorder %v575, %v550
    %vm604 = vcmp.gt.f32.partialorder %v577, %v550
    %vm605 = vcmp.gt.f32.partialorder %v579, %v550
    %vm606 = vcmp.gt.f32.partialorder %v581, %v550
    %vm607 = vcmp.gt.f32.partialorder %v583, %v550
    %vm608 = vcmp.gt.f32.partialorder %v585, %v550
    %vm609 = vcmp.gt.f32.partialorder %v587, %v550
    %vm610 = vcmp.gt.f32.partialorder %v589, %v550
    %vm611 = vcmp.gt.f32.partialorder %v591, %v550
    %vm612 = vcmp.gt.f32.partialorder %v593, %v550
    %vm613 = vcmp.gt.f32.partialorder %v595, %v550
    %vm614 = vcmp.gt.f32.partialorder %v597, %v550
    %vm615 = vcmp.gt.f32.partialorder %v599, %v550
    %vm616 = vcmp.eq.f32.partialorder %v569, %v550
    %vm617 = vcmp.eq.f32.partialorder %v571, %v550
    %vm618 = vcmp.eq.f32.partialorder %v573, %v550
    %vm619 = vcmp.eq.f32.partialorder %v575, %v550
    %vm620 = vcmp.eq.f32.partialorder %v577, %v550
    %vm621 = vcmp.eq.f32.partialorder %v579, %v550
    %vm622 = vcmp.eq.f32.partialorder %v581, %v550
    %vm623 = vcmp.eq.f32.partialorder %v583, %v550
    %vm624 = vcmp.eq.f32.partialorder %v585, %v550
    %vm625 = vcmp.eq.f32.partialorder %v587, %v550
    %vm626 = vcmp.eq.f32.partialorder %v589, %v550
    %vm627 = vcmp.eq.f32.partialorder %v591, %v550
    %vm628 = vcmp.eq.f32.partialorder %v593, %v550
    %vm629 = vcmp.eq.f32.partialorder %v595, %v550
    %vm630 = vcmp.eq.f32.partialorder %v597, %v550
    %vm631 = vcmp.eq.f32.partialorder %v599, %v550
    %vm632 = vmand %vm616, %vm300
    %vm633 = vmand %vm617, %vm301
    %vm634 = vmand %vm618, %vm302
    %vm635 = vmand %vm619, %vm303
    %vm636 = vmand %vm620, %vm304
    %vm637 = vmand %vm621, %vm305
    %vm638 = vmand %vm622, %vm306
    %vm639 = vmand %vm623, %vm307
    %vm640 = vmand %vm624, %vm308
    %vm641 = vmand %vm625, %vm309
    %vm642 = vmand %vm626, %vm310
    %vm643 = vmand %vm627, %vm311
    %vm644 = vmand %vm628, %vm312
    %vm645 = vmand %vm629, %vm313
    %vm646 = vmand %vm630, %vm314
    %vm647 = vmand %vm631, %vm315
    %vm648 = vmor %vm600, %vm632
    %vm649 = vmor %vm601, %vm633
    %vm650 = vmor %vm602, %vm634
    %vm651 = vmor %vm603, %vm635
    %vm652 = vmor %vm604, %vm636
    %vm653 = vmor %vm605, %vm637
    %vm654 = vmor %vm606, %vm638
    %vm655 = vmor %vm607, %vm639
    %vm656 = vmor %vm608, %vm640
    %vm657 = vmor %vm609, %vm641
    %vm658 = vmor %vm610, %vm642
    %vm659 = vmor %vm611, %vm643
    %vm660 = vmor %vm612, %vm644
    %vm661 = vmor %vm613, %vm645
    %vm662 = vmor %vm614, %vm646
    %vm663 = vmor %vm615, %vm647
    %v664 = vsel %vm648, 1, 0
    %v665 = vsel %vm649, 1, 0
    %v666 = vsel %vm650, 1, 0
    %v667 = vsel %vm651, 1, 0
    %v668 = vsel %vm652, 1, 0
    %v669 = vsel %vm653, 1, 0
    %v670 = vsel %vm654, 1, 0
    %v671 = vsel %vm655, 1, 0
    %v672 = vsel %vm656, 1, 0
    %v673 = vsel %vm657, 1, 0
    %v674 = vsel %vm658, 1, 0
    %v675 = vsel %vm659, 1, 0
    %v676 = vsel %vm660, 1, 0
    %v677 = vsel %vm661, 1, 0
    %v678 = vsel %vm662, 1, 0
    %v679 = vsel %vm663, 1, 0
    %v680 = vcvt.s32.f32 %v664
    %v681 = vcvt.s32.f32 %v665
    %v682 = vcvt.s32.f32 %v666
    %v683 = vcvt.s32.f32 %v667
    %v684 = vcvt.s32.f32 %v668
    %v685 = vcvt.s32.f32 %v669
    %v686 = vcvt.s32.f32 %v670
    %v687 = vcvt.s32.f32 %v671
    %v688 = vcvt.s32.f32 %v672
    %v689 = vcvt.s32.f32 %v673
    %v690 = vcvt.s32.f32 %v674
    %v691 = vcvt.s32.f32 %v675
    %v692 = vcvt.s32.f32 %v676
    %v693 = vcvt.s32.f32 %v677
    %v694 = vcvt.s32.f32 %v678
    %v695 = vcvt.s32.f32 %v679
    %v696 = vpack.c.bf16 %v681, %v680
    %v697 = vpack.c.bf16 %v683, %v682
    %v698 = vpack.c.bf16 %v685, %v684
    %v699 = vpack.c.bf16 %v687, %v686
    %v700 = vpack.c.bf16 %v689, %v688
    %v701 = vpack.c.bf16 %v691, %v690
    %v702 = vpack.c.bf16 %v693, %v692
    %v703 = vpack.c.bf16 %v695, %v694
    %704 = vmatprep.subr.bf16.mxu0 0
    %705 = vmatpush1.bf16.msra.mxu0 %v696
    %706 = vmatprep.subr.bf16.mxu0 0
    %707 = vmatpush1.bf16.msra.mxu0 %v697
    %708 = vmatprep.subr.bf16.mxu0 0
    %709 = vmatpush1.bf16.msra.mxu0 %v698
    %710 = vmatprep.subr.bf16.mxu0 0
    %711 = vmatpush1.bf16.msra.mxu0 %v699
    %712 = vmatprep.subr.bf16.mxu0 0
    %713 = vmatpush1.bf16.msra.mxu0 %v700
    %714 = vmatprep.subr.bf16.mxu0 0
    %715 = vmatpush1.bf16.msra.mxu0 %v701
    %716 = vmatprep.subr.bf16.mxu0 0
    %717 = vmatpush1.bf16.msra.mxu0 %v702
    %718 = vmatprep.subr.bf16.mxu0 0
    %719 = vmatpush1.bf16.msra.mxu0 %v703
    %720 = vmatprep.subr.bf16.mxu0 0
    %721 = vmatpush1.bf16.msra.mxu0 0
    %722 = vmatprep.subr.bf16.mxu0 0
    %723 = vmatpush1.bf16.msra.mxu0 0
    %724 = vmatprep.subr.bf16.mxu0 0
    %725 = vmatpush1.bf16.msra.mxu0 0
    %726 = vmatprep.subr.bf16.mxu0 0
    %727 = vmatpush1.bf16.msra.mxu0 0
    %728 = vmatprep.subr.bf16.mxu0 0
    %729 = vmatpush1.bf16.msra.mxu0 0
    %730 = vmatprep.subr.bf16.mxu0 0
    %731 = vmatpush1.bf16.msra.mxu0 0
    %732 = vmatprep.subr.bf16.mxu0 0
    %733 = vmatpush1.bf16.msra.mxu0 0
    %734 = vmatprep.subr.bf16.mxu0 0
    %735 = vmatpush1.bf16.msra.mxu0 0
    %736 = vmatprep.mubr.bf16.mxu0 0
    %737 = vmatmul.mubr.bf16.gmra.mrb[0].mxu0 1065369472
    %v738 = vpop.f32.mrb[0].mxu0
    %v739 = vadd.f32 0.0, %v738
    %v740 = vpop.f32.mrb[0].mxu0
    %v741 = vpop.f32.mrb[0].mxu0
    %v742 = vpop.f32.mrb[0].mxu0
    %743 = vdwg.mxu0
    %v744 = vmul.f32 %v462, 3.0
    %v745 = vmin.f32 %v744, 128.0
    %vm746 = vcmp.lt.f32.partialorder %v739, %v745
    %v747 = vsel %vm746, 1, 0
    %v748 = vcvt.s32.f32 %v747
    %v749 = vadd.f32 %v459, %v748
    %v750 = vmul.f32 %v544, %v749
    %v751 = vsel %vm121, %v750, 0.0
    %752 = vadd.xlane.f32.xlu0 %v751
    %v753 = vpop.xlane.xlu0 %752
    %v754 = vadd.f32 %v753, %v505
    %vm755 = vcmp.gt.f32.partialorder %v462, 0.0
    %v756 = vsel %vm755, 1, 0
    %v757 = vcvt.s32.f32 %v756
    %v758 = vmul.f32 %v754, %v757
    %v759 = vmax.f32 %v462, 1e-06
    %v760 = vrcp.pop %v759
    %v761 = vmul.f32 %v758, %v760
    %s762 = scalar_lea.vmem %s5, 1
    %763 = vst.msk [vmem:[%s762] sm:$0x1] %vm446, %v761
    // Predicated region
    $region34: #{tpu_custom_call.1} parent=1 // pred_check
      _
    $region35: #{tpu_custom_call.1} parent=1 // pred_check_branch
      %765 = sbr.rel (0) target = $region37
    $region36: #{tpu_custom_call.1} parent=1 // pred_region
      _
    $region37: #{tpu_custom_call.1} parent=1 // pred_fallthru
      _
    // Predicated region
    $region38: #{tpu_custom_call.1} parent=1 // pred_check
      _
    $region39: #{tpu_custom_call.1} parent=1 // pred_check_branch
      %767 = sbr.rel (0) target = $region41
    $region40: #{tpu_custom_call.1} parent=1 // pred_region
      _
    $region41: #{tpu_custom_call.1} parent=1 // pred_fallthru
      _
    %768 = vsyncpa [#allocation3], 1
    %769 = vsyncpa [#allocation5], 1

</llo_original>
